<compile_context>
chip_gen: v7x
topology: tpu7x:2x2x1
jax: 0.10.0
libtpu: 0.0.40
codegen_flags: <defaults>
</compile_context>

<pallas_src>
import functools

import jax
import jax.numpy as jnp
import numpy as np
from jax import lax
from jax.experimental import pallas as pl
from jax.experimental.pallas import tpu as pltpu


def bam_spatial_attention_kernel(x_ref, row_ref, col_ref,
                                 w1_ref, w2_ref, w3_ref, w4_ref, bn_ref,
                                 out_ref, *, H, W, d, C, Ch):
    """BAM SpatialAttention forward (eval-mode BatchNorm).

    x_ref   : (C, N, H*W)  VMEM  input, channel-major, spatial flattened on lanes
    row_ref : (N, H*W)     VMEM  int32 row index h of each flattened position
    col_ref : (N, H*W)     VMEM  int32 col index w of each flattened position
    w1_ref  : (Ch*C,)      SMEM  1x1 conv weights, [k, c] row-major
    w2_ref  : (Ch*Ch*9,)   SMEM  dilated 3x3 conv weights, [k, c, ky, kx]
    w3_ref  : (Ch*Ch*9,)   SMEM  dilated 3x3 conv weights, [k, c, ky, kx]
    w4_ref  : (Ch,)        SMEM  1x1 conv weights to 1 output channel
    bn_ref  : (5,)         SMEM  [gamma, beta, running_mean, running_var, eps]
    out_ref : (N, H*W)     VMEM  output (lane-dense; reshaped in the wrapper)
    """
    HW = H * W

    h_idx = row_ref[...]
    w_idx = col_ref[...]

    # Validity masks for the three row / col shift amounts {-d, 0, +d}
    # (zero-padding semantics of Conv2d(padding=d, dilation=d)).
    row_mask = {-d: h_idx >= d, 0: None, d: h_idx < (H - d)}
    col_mask = {-d: w_idx >= d, 0: None, d: w_idx < (W - d)}

    # Combine the 9 tap masks ONCE; shared by both dilated convs and all
    # channels (don't rely on the compiler CSE-ing repeated logical_ands).
    taps = [((ky - 1) * d, (kx - 1) * d) for ky in range(3) for kx in range(3)]
    tap_mask = {}
    for dy, dx in taps:
        rm, cm = row_mask[dy], col_mask[dx]
        if rm is None and cm is None:
            m = None
        elif rm is None:
            m = cm
        elif cm is None:
            m = rm
        else:
            m = jnp.logical_and(rm, cm)
        tap_mask[(dy, dx)] = m

    def shift2d(a, dy, dx):
        """a[:, h*W + w] -> a[:, (h+dy)*W + (w+dx)], zero outside the image."""
        s = dy * W + dx
        if s != 0:
            # roll goes to the XLU (idle slot here); any wrap-around garbage
            # lands only on positions the boundary mask zeroes out below.
            a = pltpu.roll(a, shift=(-s) % HW, axis=1)
        m = tap_mask[(dy, dx)]
        return a if m is None else jnp.where(m, a, 0.0)

    # ---- conv1: 1x1, C -> Ch (no bias): scalar-vector MACs on the VPU ----
    xs = [x_ref[c] for c in range(C)]                       # each (N, HW)
    h1 = []
    for k in range(Ch):
        acc = xs[0] * w1_ref[k * C + 0]
        for c in range(1, C):
            acc = acc + xs[c] * w1_ref[k * C + c]
        h1.append(acc)

    # ---- two dilated 3x3 convs, Ch -> Ch, padding == dilation == d ----
    def dilated_conv3x3(h_in, w_ref):
        # Pre-shift every input channel once (9 taps each); shared across all
        # output channels. Stays entirely in vregs.
        shifted = [[shift2d(h_in[c], dy, dx) for (dy, dx) in taps]
                   for c in range(Ch)]
        outs = []
        for k in range(Ch):
            acc = None
            for c in range(Ch):
                for t in range(9):
                    term = shifted[c][t] * w_ref[(k * Ch + c) * 9 + t]
                    acc = term if acc is None else acc + term
            outs.append(acc)
        return outs

    h2 = dilated_conv3x3(h1, w2_ref)      # no VMEM round-trip
    h3 = dilated_conv3x3(h2, w3_ref)

    # ---- conv4 (1x1, Ch -> 1, no bias) fused with BatchNorm2d(1) eval ----
    # TODO(synk): BatchNorm uses running statistics (eval mode); training-mode
    # batch statistics are not computed in-kernel.
    gamma = bn_ref[0]
    beta = bn_ref[1]
    mu = bn_ref[2]
    var = bn_ref[3]
    eps = bn_ref[4]
    scale = gamma * lax.rsqrt(var + eps)        # scalar path
    bias = beta - mu * scale                    # scalar path

    y = h3[0] * (w4_ref[0] * scale)
    for c in range(1, Ch):
        y = y + h3[c] * (w4_ref[c] * scale)
    out_ref[...] = y + bias


def spatial_attention(x, w1, w2, w3, w4, bn, dilation):
    """Wrapper: lane-dense relayout + flattened SMEM weights, single kernel call."""
    N, C, H, W = x.shape
    Ch = w1.shape[0]
    d = int(dilation)
    HW = H * W

    # Lane-dense, channel-major input: (C, N, H*W). Pure layout plumbing in XLA.
    x_l = jnp.transpose(x, (1, 0, 2, 3)).reshape(C, N, HW).astype(jnp.float32)

    # Per-position row / col indices, used in-kernel to build the zero-padding
    # boundary masks (avoids vector integer div/mod inside the kernel).
    flat = jnp.arange(HW, dtype=jnp.int32)
    row = jnp.broadcast_to(flat // W, (N, HW))
    col = jnp.broadcast_to(flat % W, (N, HW))

    w1_s = w1.reshape(-1).astype(jnp.float32)   # (Ch*C,)
    w2_s = w2.reshape(-1).astype(jnp.float32)   # (Ch*Ch*9,)
    w3_s = w3.reshape(-1).astype(jnp.float32)   # (Ch*Ch*9,)
    w4_s = w4.reshape(-1).astype(jnp.float32)   # (Ch,)
    bn_s = bn.astype(jnp.float32)               # (5,)

    kernel = functools.partial(bam_spatial_attention_kernel,
                               H=H, W=W, d=d, C=C, Ch=Ch)

    out_flat = pl.pallas_call(
        kernel,
        out_shape=jax.ShapeDtypeStruct((N, HW), jnp.float32),
        in_specs=[
            pl.BlockSpec(memory_space=pltpu.MemorySpace.VMEM),   # x (C,N,HW)
            pl.BlockSpec(memory_space=pltpu.MemorySpace.VMEM),   # row idx
            pl.BlockSpec(memory_space=pltpu.MemorySpace.VMEM),   # col idx
            pl.BlockSpec(memory_space=pltpu.MemorySpace.SMEM),   # w1
            pl.BlockSpec(memory_space=pltpu.MemorySpace.SMEM),   # w2
            pl.BlockSpec(memory_space=pltpu.MemorySpace.SMEM),   # w3
            pl.BlockSpec(memory_space=pltpu.MemorySpace.SMEM),   # w4
            pl.BlockSpec(memory_space=pltpu.MemorySpace.SMEM),   # bn params
        ],
        out_specs=pl.BlockSpec(memory_space=pltpu.MemorySpace.VMEM),
    )(x_l, row, col, w1_s, w2_s, w3_s, w4_s, bn_s)

    # Lane-dense (N, H*W) -> module's (N, 1, H, W) output; layout plumbing only.
    return out_flat.reshape(N, 1, H, W)


def reference_forward(x, w1, w2, w3, w4, bn, dilation):
    """Pure-JAX reference of the PyTorch forward (eval-mode BN)."""
    dn = ('NCHW', 'OIHW', 'NCHW')
    pad = [(dilation, dilation), (dilation, dilation)]
    h = lax.conv_general_dilated(x, w1, (1, 1), 'VALID', dimension_numbers=dn)
    h = lax.conv_general_dilated(h, w2, (1, 1), pad,
                                 rhs_dilation=(dilation, dilation),
                                 dimension_numbers=dn)
    h = lax.conv_general_dilated(h, w3, (1, 1), pad,
                                 rhs_dilation=(dilation, dilation),
                                 dimension_numbers=dn)
    h = lax.conv_general_dilated(h, w4, (1, 1), 'VALID', dimension_numbers=dn)
    gamma, beta, mu, var, eps = (bn[0], bn[1], bn[2], bn[3], bn[4])
    return (h - mu) / jnp.sqrt(var + eps) * gamma + beta


if __name__ == "__main__":
    key = jax.random.PRNGKey(0)
    N, C, H, W = 2, 4, 16, 16
    reduction_ratio, dilation = 4, 4
    Ch = C // reduction_ratio  # hidden_channels = 1

    k_x, k1, k2, k3, k4 = jax.random.split(key, 5)
    x = jax.random.normal(k_x, (N, C, H, W), jnp.float32)
    # Conv2d weight shapes (OIHW), deterministic synthetic init.
    w1 = 0.5 * jax.random.normal(k1, (Ch, C, 1, 1), jnp.float32)
    w2 = 0.5 * jax.random.normal(k2, (Ch, Ch, 3, 3), jnp.float32)
    w3 = 0.5 * jax.random.normal(k3, (Ch, Ch, 3, 3), jnp.float32)
    w4 = 0.5 * jax.random.normal(k4, (1, Ch, 1, 1), jnp.float32)
    # Freshly-initialized BatchNorm2d(1) eval-mode params:
    # [gamma, beta, running_mean, running_var, eps]
    bn = jnp.array([1.0, 0.0, 0.0, 1.0, 1e-5], jnp.float32)

    out = spatial_attention(x, w1, w2, w3, w4, bn, dilation)
    out = jax.block_until_ready(out)

    ref = reference_forward(x, w1, w2, w3, w4, bn, dilation)
    assert out.shape == (N, 1, H, W)
    np.testing.assert_allclose(np.asarray(out), np.asarray(ref),
                               rtol=1e-4, atol=1e-4)
    print("KERNEL_OK")
</pallas_src>

<mosaic_0001>
module attributes {stable_mosaic.version = 11 : i64} {
  func.func @bam_spatial_attention_kernel(%arg0: memref<4x2x256xf32, #tpu.memory_space<vmem>>, %arg1: memref<2x256xi32, #tpu.memory_space<vmem>>, %arg2: memref<2x256xi32, #tpu.memory_space<vmem>>, %arg3: memref<4xf32, #tpu.memory_space<smem>>, %arg4: memref<9xf32, #tpu.memory_space<smem>>, %arg5: memref<9xf32, #tpu.memory_space<smem>>, %arg6: memref<1xf32, #tpu.memory_space<smem>>, %arg7: memref<5xf32, #tpu.memory_space<smem>>, %arg8: memref<2x256xf32, #tpu.memory_space<vmem>>) attributes {dimension_semantics = [], scalar_prefetch = 0 : i64, scratch_operands = 0 : i64, tpu.core_type = #tpu.core_type<tc>} {
    %c0 = arith.constant 0 : index
    %c0_0 = arith.constant 0 : index
    %0 = vector.load %arg1[%c0, %c0_0] : memref<2x256xi32, #tpu.memory_space<vmem>>, vector<2x256xi32>
    %c0_1 = arith.constant 0 : index
    %c0_2 = arith.constant 0 : index
    %1 = vector.load %arg2[%c0_1, %c0_2] : memref<2x256xi32, #tpu.memory_space<vmem>>, vector<2x256xi32>
    %c4_i32 = arith.constant 4 : i32
    %2 = vector.broadcast %c4_i32 : i32 to vector<2x256xi32>
    %3 = arith.cmpi sge, %0, %2 : vector<2x256xi32>
    %c12_i32 = arith.constant 12 : i32
    %4 = vector.broadcast %c12_i32 : i32 to vector<2x256xi32>
    %5 = arith.cmpi slt, %0, %4 : vector<2x256xi32>
    %c4_i32_3 = arith.constant 4 : i32
    %6 = vector.broadcast %c4_i32_3 : i32 to vector<2x256xi32>
    %7 = arith.cmpi sge, %1, %6 : vector<2x256xi32>
    %c12_i32_4 = arith.constant 12 : i32
    %8 = vector.broadcast %c12_i32_4 : i32 to vector<2x256xi32>
    %9 = arith.cmpi slt, %1, %8 : vector<2x256xi32>
    %10 = arith.andi %3, %7 : vector<2x256xi1>
    %11 = arith.andi %3, %9 : vector<2x256xi1>
    %12 = arith.andi %5, %7 : vector<2x256xi1>
    %13 = arith.andi %5, %9 : vector<2x256xi1>
    %c0_5 = arith.constant 0 : index
    %c0_6 = arith.constant 0 : index
    %c0_7 = arith.constant 0 : index
    %14 = vector.load %arg0[%c0_5, %c0_6, %c0_7] : memref<4x2x256xf32, #tpu.memory_space<vmem>>, vector<1x2x256xf32>
    %15 = vector.shape_cast %14 : vector<1x2x256xf32> to vector<2x256xf32>
    %c1 = arith.constant 1 : index
    %c0_8 = arith.constant 0 : index
    %c0_9 = arith.constant 0 : index
    %16 = vector.load %arg0[%c1, %c0_8, %c0_9] : memref<4x2x256xf32, #tpu.memory_space<vmem>>, vector<1x2x256xf32>
    %17 = vector.shape_cast %16 : vector<1x2x256xf32> to vector<2x256xf32>
    %c2 = arith.constant 2 : index
    %c0_10 = arith.constant 0 : index
    %c0_11 = arith.constant 0 : index
    %18 = vector.load %arg0[%c2, %c0_10, %c0_11] : memref<4x2x256xf32, #tpu.memory_space<vmem>>, vector<1x2x256xf32>
    %19 = vector.shape_cast %18 : vector<1x2x256xf32> to vector<2x256xf32>
    %c3 = arith.constant 3 : index
    %c0_12 = arith.constant 0 : index
    %c0_13 = arith.constant 0 : index
    %20 = vector.load %arg0[%c3, %c0_12, %c0_13] : memref<4x2x256xf32, #tpu.memory_space<vmem>>, vector<1x2x256xf32>
    %21 = vector.shape_cast %20 : vector<1x2x256xf32> to vector<2x256xf32>
    %c0_14 = arith.constant 0 : index
    %22 = memref.load %arg3[%c0_14] : memref<4xf32, #tpu.memory_space<smem>>
    %23 = vector.broadcast %22 : f32 to vector<2x256xf32>
    %24 = arith.mulf %15, %23 : vector<2x256xf32>
    %c1_15 = arith.constant 1 : index
    %25 = memref.load %arg3[%c1_15] : memref<4xf32, #tpu.memory_space<smem>>
    %26 = vector.broadcast %25 : f32 to vector<2x256xf32>
    %27 = arith.mulf %17, %26 : vector<2x256xf32>
    %28 = arith.addf %24, %27 : vector<2x256xf32>
    %c2_16 = arith.constant 2 : index
    %29 = memref.load %arg3[%c2_16] : memref<4xf32, #tpu.memory_space<smem>>
    %30 = vector.broadcast %29 : f32 to vector<2x256xf32>
    %31 = arith.mulf %19, %30 : vector<2x256xf32>
    %32 = arith.addf %28, %31 : vector<2x256xf32>
    %c3_17 = arith.constant 3 : index
    %33 = memref.load %arg3[%c3_17] : memref<4xf32, #tpu.memory_space<smem>>
    %34 = vector.broadcast %33 : f32 to vector<2x256xf32>
    %35 = arith.mulf %21, %34 : vector<2x256xf32>
    %36 = arith.addf %32, %35 : vector<2x256xf32>
    %c68_i32 = arith.constant 68 : i32
    %37 = tpu.dynamic_rotate %36 by %c68_i32 dim 1 : vector<2x256xf32>, i32 -> vector<2x256xf32>
    %cst = arith.constant 0.000000e+00 : f32
    %38 = vector.broadcast %cst : f32 to vector<2x256xf32>
    %39 = arith.select %10, %37, %38 : vector<2x256xi1>, vector<2x256xf32>
    %c64_i32 = arith.constant 64 : i32
    %40 = tpu.dynamic_rotate %36 by %c64_i32 dim 1 : vector<2x256xf32>, i32 -> vector<2x256xf32>
    %cst_18 = arith.constant 0.000000e+00 : f32
    %41 = vector.broadcast %cst_18 : f32 to vector<2x256xf32>
    %42 = arith.select %3, %40, %41 : vector<2x256xi1>, vector<2x256xf32>
    %c60_i32 = arith.constant 60 : i32
    %43 = tpu.dynamic_rotate %36 by %c60_i32 dim 1 : vector<2x256xf32>, i32 -> vector<2x256xf32>
    %cst_19 = arith.constant 0.000000e+00 : f32
    %44 = vector.broadcast %cst_19 : f32 to vector<2x256xf32>
    %45 = arith.select %11, %43, %44 : vector<2x256xi1>, vector<2x256xf32>
    %c4_i32_20 = arith.constant 4 : i32
    %46 = tpu.dynamic_rotate %36 by %c4_i32_20 dim 1 : vector<2x256xf32>, i32 -> vector<2x256xf32>
    %cst_21 = arith.constant 0.000000e+00 : f32
    %47 = vector.broadcast %cst_21 : f32 to vector<2x256xf32>
    %48 = arith.select %7, %46, %47 : vector<2x256xi1>, vector<2x256xf32>
    %c252_i32 = arith.constant 252 : i32
    %49 = tpu.dynamic_rotate %36 by %c252_i32 dim 1 : vector<2x256xf32>, i32 -> vector<2x256xf32>
    %cst_22 = arith.constant 0.000000e+00 : f32
    %50 = vector.broadcast %cst_22 : f32 to vector<2x256xf32>
    %51 = arith.select %9, %49, %50 : vector<2x256xi1>, vector<2x256xf32>
    %c196_i32 = arith.constant 196 : i32
    %52 = tpu.dynamic_rotate %36 by %c196_i32 dim 1 : vector<2x256xf32>, i32 -> vector<2x256xf32>
    %cst_23 = arith.constant 0.000000e+00 : f32
    %53 = vector.broadcast %cst_23 : f32 to vector<2x256xf32>
    %54 = arith.select %12, %52, %53 : vector<2x256xi1>, vector<2x256xf32>
    %c192_i32 = arith.constant 192 : i32
    %55 = tpu.dynamic_rotate %36 by %c192_i32 dim 1 : vector<2x256xf32>, i32 -> vector<2x256xf32>
    %cst_24 = arith.constant 0.000000e+00 : f32
    %56 = vector.broadcast %cst_24 : f32 to vector<2x256xf32>
    %57 = arith.select %5, %55, %56 : vector<2x256xi1>, vector<2x256xf32>
    %c188_i32 = arith.constant 188 : i32
    %58 = tpu.dynamic_rotate %36 by %c188_i32 dim 1 : vector<2x256xf32>, i32 -> vector<2x256xf32>
    %cst_25 = arith.constant 0.000000e+00 : f32
    %59 = vector.broadcast %cst_25 : f32 to vector<2x256xf32>
    %60 = arith.select %13, %58, %59 : vector<2x256xi1>, vector<2x256xf32>
    %c0_26 = arith.constant 0 : index
    %61 = memref.load %arg4[%c0_26] : memref<9xf32, #tpu.memory_space<smem>>
    %62 = vector.broadcast %61 : f32 to vector<2x256xf32>
    %63 = arith.mulf %39, %62 : vector<2x256xf32>
    %c1_27 = arith.constant 1 : index
    %64 = memref.load %arg4[%c1_27] : memref<9xf32, #tpu.memory_space<smem>>
    %65 = vector.broadcast %64 : f32 to vector<2x256xf32>
    %66 = arith.mulf %42, %65 : vector<2x256xf32>
    %67 = arith.addf %63, %66 : vector<2x256xf32>
    %c2_28 = arith.constant 2 : index
    %68 = memref.load %arg4[%c2_28] : memref<9xf32, #tpu.memory_space<smem>>
    %69 = vector.broadcast %68 : f32 to vector<2x256xf32>
    %70 = arith.mulf %45, %69 : vector<2x256xf32>
    %71 = arith.addf %67, %70 : vector<2x256xf32>
    %c3_29 = arith.constant 3 : index
    %72 = memref.load %arg4[%c3_29] : memref<9xf32, #tpu.memory_space<smem>>
    %73 = vector.broadcast %72 : f32 to vector<2x256xf32>
    %74 = arith.mulf %48, %73 : vector<2x256xf32>
    %75 = arith.addf %71, %74 : vector<2x256xf32>
    %c4 = arith.constant 4 : index
    %76 = memref.load %arg4[%c4] : memref<9xf32, #tpu.memory_space<smem>>
    %77 = vector.broadcast %76 : f32 to vector<2x256xf32>
    %78 = arith.mulf %36, %77 : vector<2x256xf32>
    %79 = arith.addf %75, %78 : vector<2x256xf32>
    %c5 = arith.constant 5 : index
    %80 = memref.load %arg4[%c5] : memref<9xf32, #tpu.memory_space<smem>>
    %81 = vector.broadcast %80 : f32 to vector<2x256xf32>
    %82 = arith.mulf %51, %81 : vector<2x256xf32>
    %83 = arith.addf %79, %82 : vector<2x256xf32>
    %c6 = arith.constant 6 : index
    %84 = memref.load %arg4[%c6] : memref<9xf32, #tpu.memory_space<smem>>
    %85 = vector.broadcast %84 : f32 to vector<2x256xf32>
    %86 = arith.mulf %54, %85 : vector<2x256xf32>
    %87 = arith.addf %83, %86 : vector<2x256xf32>
    %c7 = arith.constant 7 : index
    %88 = memref.load %arg4[%c7] : memref<9xf32, #tpu.memory_space<smem>>
    %89 = vector.broadcast %88 : f32 to vector<2x256xf32>
    %90 = arith.mulf %57, %89 : vector<2x256xf32>
    %91 = arith.addf %87, %90 : vector<2x256xf32>
    %c8 = arith.constant 8 : index
    %92 = memref.load %arg4[%c8] : memref<9xf32, #tpu.memory_space<smem>>
    %93 = vector.broadcast %92 : f32 to vector<2x256xf32>
    %94 = arith.mulf %60, %93 : vector<2x256xf32>
    %95 = arith.addf %91, %94 : vector<2x256xf32>
    %c68_i32_30 = arith.constant 68 : i32
    %96 = tpu.dynamic_rotate %95 by %c68_i32_30 dim 1 : vector<2x256xf32>, i32 -> vector<2x256xf32>
    %cst_31 = arith.constant 0.000000e+00 : f32
    %97 = vector.broadcast %cst_31 : f32 to vector<2x256xf32>
    %98 = arith.select %10, %96, %97 : vector<2x256xi1>, vector<2x256xf32>
    %c64_i32_32 = arith.constant 64 : i32
    %99 = tpu.dynamic_rotate %95 by %c64_i32_32 dim 1 : vector<2x256xf32>, i32 -> vector<2x256xf32>
    %cst_33 = arith.constant 0.000000e+00 : f32
    %100 = vector.broadcast %cst_33 : f32 to vector<2x256xf32>
    %101 = arith.select %3, %99, %100 : vector<2x256xi1>, vector<2x256xf32>
    %c60_i32_34 = arith.constant 60 : i32
    %102 = tpu.dynamic_rotate %95 by %c60_i32_34 dim 1 : vector<2x256xf32>, i32 -> vector<2x256xf32>
    %cst_35 = arith.constant 0.000000e+00 : f32
    %103 = vector.broadcast %cst_35 : f32 to vector<2x256xf32>
    %104 = arith.select %11, %102, %103 : vector<2x256xi1>, vector<2x256xf32>
    %c4_i32_36 = arith.constant 4 : i32
    %105 = tpu.dynamic_rotate %95 by %c4_i32_36 dim 1 : vector<2x256xf32>, i32 -> vector<2x256xf32>
    %cst_37 = arith.constant 0.000000e+00 : f32
    %106 = vector.broadcast %cst_37 : f32 to vector<2x256xf32>
    %107 = arith.select %7, %105, %106 : vector<2x256xi1>, vector<2x256xf32>
    %c252_i32_38 = arith.constant 252 : i32
    %108 = tpu.dynamic_rotate %95 by %c252_i32_38 dim 1 : vector<2x256xf32>, i32 -> vector<2x256xf32>
    %cst_39 = arith.constant 0.000000e+00 : f32
    %109 = vector.broadcast %cst_39 : f32 to vector<2x256xf32>
    %110 = arith.select %9, %108, %109 : vector<2x256xi1>, vector<2x256xf32>
    %c196_i32_40 = arith.constant 196 : i32
    %111 = tpu.dynamic_rotate %95 by %c196_i32_40 dim 1 : vector<2x256xf32>, i32 -> vector<2x256xf32>
    %cst_41 = arith.constant 0.000000e+00 : f32
    %112 = vector.broadcast %cst_41 : f32 to vector<2x256xf32>
    %113 = arith.select %12, %111, %112 : vector<2x256xi1>, vector<2x256xf32>
    %c192_i32_42 = arith.constant 192 : i32
    %114 = tpu.dynamic_rotate %95 by %c192_i32_42 dim 1 : vector<2x256xf32>, i32 -> vector<2x256xf32>
    %cst_43 = arith.constant 0.000000e+00 : f32
    %115 = vector.broadcast %cst_43 : f32 to vector<2x256xf32>
    %116 = arith.select %5, %114, %115 : vector<2x256xi1>, vector<2x256xf32>
    %c188_i32_44 = arith.constant 188 : i32
    %117 = tpu.dynamic_rotate %95 by %c188_i32_44 dim 1 : vector<2x256xf32>, i32 -> vector<2x256xf32>
    %cst_45 = arith.constant 0.000000e+00 : f32
    %118 = vector.broadcast %cst_45 : f32 to vector<2x256xf32>
    %119 = arith.select %13, %117, %118 : vector<2x256xi1>, vector<2x256xf32>
    %c0_46 = arith.constant 0 : index
    %120 = memref.load %arg5[%c0_46] : memref<9xf32, #tpu.memory_space<smem>>
    %121 = vector.broadcast %120 : f32 to vector<2x256xf32>
    %122 = arith.mulf %98, %121 : vector<2x256xf32>
    %c1_47 = arith.constant 1 : index
    %123 = memref.load %arg5[%c1_47] : memref<9xf32, #tpu.memory_space<smem>>
    %124 = vector.broadcast %123 : f32 to vector<2x256xf32>
    %125 = arith.mulf %101, %124 : vector<2x256xf32>
    %126 = arith.addf %122, %125 : vector<2x256xf32>
    %c2_48 = arith.constant 2 : index
    %127 = memref.load %arg5[%c2_48] : memref<9xf32, #tpu.memory_space<smem>>
    %128 = vector.broadcast %127 : f32 to vector<2x256xf32>
    %129 = arith.mulf %104, %128 : vector<2x256xf32>
    %130 = arith.addf %126, %129 : vector<2x256xf32>
    %c3_49 = arith.constant 3 : index
    %131 = memref.load %arg5[%c3_49] : memref<9xf32, #tpu.memory_space<smem>>
    %132 = vector.broadcast %131 : f32 to vector<2x256xf32>
    %133 = arith.mulf %107, %132 : vector<2x256xf32>
    %134 = arith.addf %130, %133 : vector<2x256xf32>
    %c4_50 = arith.constant 4 : index
    %135 = memref.load %arg5[%c4_50] : memref<9xf32, #tpu.memory_space<smem>>
    %136 = vector.broadcast %135 : f32 to vector<2x256xf32>
    %137 = arith.mulf %95, %136 : vector<2x256xf32>
    %138 = arith.addf %134, %137 : vector<2x256xf32>
    %c5_51 = arith.constant 5 : index
    %139 = memref.load %arg5[%c5_51] : memref<9xf32, #tpu.memory_space<smem>>
    %140 = vector.broadcast %139 : f32 to vector<2x256xf32>
    %141 = arith.mulf %110, %140 : vector<2x256xf32>
    %142 = arith.addf %138, %141 : vector<2x256xf32>
    %c6_52 = arith.constant 6 : index
    %143 = memref.load %arg5[%c6_52] : memref<9xf32, #tpu.memory_space<smem>>
    %144 = vector.broadcast %143 : f32 to vector<2x256xf32>
    %145 = arith.mulf %113, %144 : vector<2x256xf32>
    %146 = arith.addf %142, %145 : vector<2x256xf32>
    %c7_53 = arith.constant 7 : index
    %147 = memref.load %arg5[%c7_53] : memref<9xf32, #tpu.memory_space<smem>>
    %148 = vector.broadcast %147 : f32 to vector<2x256xf32>
    %149 = arith.mulf %116, %148 : vector<2x256xf32>
    %150 = arith.addf %146, %149 : vector<2x256xf32>
    %c8_54 = arith.constant 8 : index
    %151 = memref.load %arg5[%c8_54] : memref<9xf32, #tpu.memory_space<smem>>
    %152 = vector.broadcast %151 : f32 to vector<2x256xf32>
    %153 = arith.mulf %119, %152 : vector<2x256xf32>
    %154 = arith.addf %150, %153 : vector<2x256xf32>
    %c0_55 = arith.constant 0 : index
    %155 = memref.load %arg7[%c0_55] : memref<5xf32, #tpu.memory_space<smem>>
    %c1_56 = arith.constant 1 : index
    %156 = memref.load %arg7[%c1_56] : memref<5xf32, #tpu.memory_space<smem>>
    %c2_57 = arith.constant 2 : index
    %157 = memref.load %arg7[%c2_57] : memref<5xf32, #tpu.memory_space<smem>>
    %c3_58 = arith.constant 3 : index
    %158 = memref.load %arg7[%c3_58] : memref<5xf32, #tpu.memory_space<smem>>
    %c4_59 = arith.constant 4 : index
    %159 = memref.load %arg7[%c4_59] : memref<5xf32, #tpu.memory_space<smem>>
    %160 = arith.addf %158, %159 : f32
    %161 = math.rsqrt %160 : f32
    %162 = arith.mulf %155, %161 : f32
    %163 = arith.mulf %157, %162 : f32
    %164 = arith.subf %156, %163 : f32
    %c0_60 = arith.constant 0 : index
    %165 = memref.load %arg6[%c0_60] : memref<1xf32, #tpu.memory_space<smem>>
    %166 = arith.mulf %165, %162 : f32
    %167 = vector.broadcast %166 : f32 to vector<2x256xf32>
    %168 = arith.mulf %154, %167 : vector<2x256xf32>
    %169 = vector.broadcast %164 : f32 to vector<2x256xf32>
    %170 = arith.addf %168, %169 : vector<2x256xf32>
    %c0_61 = arith.constant 0 : index
    %c0_62 = arith.constant 0 : index
    %171 = vector.load %arg8[%c0_61, %c0_62] : memref<2x256xf32, #tpu.memory_space<vmem>>, vector<2x256xf32>
    tpu.vector_store %arg8[%c0_61, %c0_62], %170 {strides = array<i32>} : memref<2x256xf32, #tpu.memory_space<vmem>>, vector<2x256xf32>,
    return
  }
}

</mosaic_0001>

<llo_original>
// kernel: tpu_custom_call.1
$region0: #{tpu_custom_call.1}
  #allocation0 [shape = 'u32[]', space=smem, size = 0x4, offset = 0x4, fixed_abs, tag = 'smem constant byte address 0x4 - core index']
  #allocation1 [shape = 'u32[144,128]{1,0:T(1,128)}', space=vmem, size = 0x12000, scoped, tag = 'internal scratch']
  #allocation2 [shape = 'f32[1]{0:T(128)S(6)}', space=smem, size = 0x200, scoped, tag = 'scoped memory for tpu_custom_call.1']
  %s0 = inlined_call_operand.hbm [shape: f32[4,2,256], index: 0, kind: input, shape index: {}]
  %s1 = inlined_call_operand.vmem [shape: s32[2,256], index: 1, kind: input, shape index: {}]
  %s2 = inlined_call_operand.vmem [shape: s32[2,256], index: 2, kind: input, shape index: {}]
  %s3 = inlined_call_operand.vmem [shape: f32[4], index: 3, kind: input, shape index: {}]
  %s4 = inlined_call_operand.vmem [shape: f32[9], index: 4, kind: input, shape index: {}]
  %s5 = inlined_call_operand.vmem [shape: f32[9], index: 5, kind: input, shape index: {}]
  %s6 = inlined_call_operand.<no memory space> [shape: f32[1], index: 6, kind: input, shape index: {}]
  %s7 = inlined_call_operand.vmem [shape: f32[5], index: 7, kind: input, shape index: {}]
  %s8 = inlined_call_operand.hbm [shape: f32[2,256], index: 8, kind: output, shape index: {}]
  %s9 = sld [smem:[#allocation0]]
  $region62: #{tpu_custom_call.1} parent=0
    _
  %s11 = ssub.s32 1, %s9
  %s12 = scalar_select 0, %s11, %s9
  %13 = sst [smem:[#allocation2]] %s6
  $region1: #{tpu_custom_call.1} parent=0
    #allocation3 [shape = 'u8[8192]{0}', space=vmem, size = 0x2000, scoped, tag = 'input window, operand 0, single buffered']
    #allocation4 [shape = 's32[1]{0}', space=sflag, size = 0x4, scoped, tag = 'scoped memory for tpu_custom_call.1']
    #allocation5 [shape = 's32[1]{0}', space=sflag, size = 0x4, scoped, tag = 'scoped memory for tpu_custom_call.1']
    #allocation6 [shape = 's32[1]{0}', space=sflag, size = 0x4, scoped, tag = 'scoped memory for tpu_custom_call.1']
    #allocation7 [shape = 'u8[512]{0}', space=smem, size = 0x200, scoped, tag = 'input window, operand 3, single buffered']
    #allocation8 [shape = 'u8[512]{0}', space=smem, size = 0x200, scoped, tag = 'input window, operand 4, single buffered']
    #allocation9 [shape = 's32[1]{0}', space=sflag, size = 0x4, scoped, tag = 'scoped memory for tpu_custom_call.1']
    #allocation10 [shape = 'u8[512]{0}', space=smem, size = 0x200, scoped, tag = 'input window, operand 5, single buffered']
    #allocation11 [shape = 'u8[512]{0}', space=smem, size = 0x200, scoped, tag = 'input window, operand 7, single buffered']
    #allocation12 [shape = 's32[1]{0}', space=sflag, size = 0x4, scoped, tag = 'scoped memory for tpu_custom_call.1']
    #allocation13 [shape = 'u8[2048]{0}', space=vmem, size = 0x800, scoped, tag = 'output window, operand 0, single buffered']
    %14 = vsyncpa [#allocation4], 0
    %15 = vsyncpa [#allocation6], 0
    %16 = vsyncpa [#allocation9], 0
    %17 = vsyncpa [#allocation12], 0
    %18 = vsyncpa [#allocation5], 0
    // Predicated region
    $region2: #{tpu_custom_call.1} parent=1 // pred_check
      _
    $region3: #{tpu_custom_call.1} parent=1 // pred_check_branch
      %20 = sbr.rel (0) target = $region5
    $region4: #{tpu_custom_call.1} parent=1 // pred_region
      %s22 = ssub.s32 256, 256
      %23 = vsyncadd [#allocation4], %s22
      %s24 = sshll.u32 [#allocation3], 4
      %s25 = int_to_ptr.vmem [resolvable:$true] %s24
      %30 = dma.hbm_to_vmem [thread:$0]  %s0, 256, %s25, [#allocation4], 64, 64, 4
    $region5: #{tpu_custom_call.1} parent=1 // pred_fallthru
      _
    // Predicated region
    $region6: #{tpu_custom_call.1} parent=1 // pred_check
      _
    $region7: #{tpu_custom_call.1} parent=1 // pred_check_branch
      %32 = sbr.rel (0) target = $region9
    $region8: #{tpu_custom_call.1} parent=1 // pred_region
      _
    $region9: #{tpu_custom_call.1} parent=1 // pred_fallthru
      _
    // Predicated region
    $region10: #{tpu_custom_call.1} parent=1 // pred_check
      _
    $region11: #{tpu_custom_call.1} parent=1 // pred_check_branch
      %34 = sbr.rel (0) target = $region13
    $region12: #{tpu_custom_call.1} parent=1 // pred_region
      _
    $region13: #{tpu_custom_call.1} parent=1 // pred_fallthru
      _
    // Predicated region
    $region14: #{tpu_custom_call.1} parent=1 // pred_check
      _
    $region15: #{tpu_custom_call.1} parent=1 // pred_check_branch
      %36 = sbr.rel (0) target = $region17
    $region16: #{tpu_custom_call.1} parent=1 // pred_region
      %s38 = ssub.s32 16, 16
      %39 = vsyncadd [#allocation6], %s38
      %s41 = sshll.u32 %s3, 4
      %s42 = int_to_ptr.vmem [resolvable:$true] %s41
      %44 = dma.vmem_to_smem %s42, 16, [#allocation7], [#allocation6]
    $region17: #{tpu_custom_call.1} parent=1 // pred_fallthru
      _
    // Predicated region
    $region18: #{tpu_custom_call.1} parent=1 // pred_check
      _
    $region19: #{tpu_custom_call.1} parent=1 // pred_check_branch
      %46 = sbr.rel (0) target = $region21
    $region20: #{tpu_custom_call.1} parent=1 // pred_region
      %s48 = ssub.s32 16, 16
      %49 = vsyncadd [#allocation9], %s48
      %s51 = sshll.u32 %s4, 4
      %s52 = int_to_ptr.vmem [resolvable:$true] %s51
      %54 = dma.vmem_to_smem %s52, 16, [#allocation8], [#allocation9]
    $region21: #{tpu_custom_call.1} parent=1 // pred_fallthru
      _
    // Predicated region
    $region22: #{tpu_custom_call.1} parent=1 // pred_check
      _
    $region23: #{tpu_custom_call.1} parent=1 // pred_check_branch
      %56 = sbr.rel (0) target = $region25
    $region24: #{tpu_custom_call.1} parent=1 // pred_region
      %s58 = ssub.s32 16, 16
      %59 = vsyncadd [#allocation9], %s58
      %s61 = sshll.u32 %s5, 4
      %s62 = int_to_ptr.vmem [resolvable:$true] %s61
      %64 = dma.vmem_to_smem %s62, 16, [#allocation10], [#allocation9]
    $region25: #{tpu_custom_call.1} parent=1 // pred_fallthru
      _
    // Predicated region
    $region26: #{tpu_custom_call.1} parent=1 // pred_check
      _
    $region27: #{tpu_custom_call.1} parent=1 // pred_check_branch
      %66 = sbr.rel (0) target = $region29
    $region28: #{tpu_custom_call.1} parent=1 // pred_region
      _
    $region29: #{tpu_custom_call.1} parent=1 // pred_fallthru
      _
    // Predicated region
    $region30: #{tpu_custom_call.1} parent=1 // pred_check
      _
    $region31: #{tpu_custom_call.1} parent=1 // pred_check_branch
      %68 = sbr.rel (0) target = $region33
    $region32: #{tpu_custom_call.1} parent=1 // pred_region
      %s70 = ssub.s32 16, 16
      %71 = vsyncadd [#allocation12], %s70
      %s73 = sshll.u32 %s7, 4
      %s74 = int_to_ptr.vmem [resolvable:$true] %s73
      %76 = dma.vmem_to_smem %s74, 16, [#allocation11], [#allocation12]
    $region33: #{tpu_custom_call.1} parent=1 // pred_fallthru
      _
    // Predicated region
    $region34: #{tpu_custom_call.1} parent=1 // pred_check
      _
    $region35: #{tpu_custom_call.1} parent=1 // pred_check_branch
      %78 = sbr.rel (0) target = $region37
    $region36: #{tpu_custom_call.1} parent=1 // pred_region
      %79 = dma.done [#allocation4], 256
    $region37: #{tpu_custom_call.1} parent=1 // pred_fallthru
      _
    // Predicated region
    $region38: #{tpu_custom_call.1} parent=1 // pred_check
      _
    $region39: #{tpu_custom_call.1} parent=1 // pred_check_branch
      %81 = sbr.rel (0) target = $region41
    $region40: #{tpu_custom_call.1} parent=1 // pred_region
      %82 = dma.done [#allocation6], 16
    $region41: #{tpu_custom_call.1} parent=1 // pred_fallthru
      _
    // Predicated region
    $region42: #{tpu_custom_call.1} parent=1 // pred_check
      _
    $region43: #{tpu_custom_call.1} parent=1 // pred_check_branch
      %84 = sbr.rel (0) target = $region45
    $region44: #{tpu_custom_call.1} parent=1 // pred_region
      %85 = dma.done [#allocation9], 16
    $region45: #{tpu_custom_call.1} parent=1 // pred_fallthru
      _
    // Predicated region
    $region46: #{tpu_custom_call.1} parent=1 // pred_check
      _
    $region47: #{tpu_custom_call.1} parent=1 // pred_check_branch
      %87 = sbr.rel (0) target = $region49
    $region48: #{tpu_custom_call.1} parent=1 // pred_region
      %88 = dma.done [#allocation9], 16
    $region49: #{tpu_custom_call.1} parent=1 // pred_fallthru
      _
    // Predicated region
    $region50: #{tpu_custom_call.1} parent=1 // pred_check
      _
    $region51: #{tpu_custom_call.1} parent=1 // pred_check_branch
      %90 = sbr.rel (0) target = $region53
    $region52: #{tpu_custom_call.1} parent=1 // pred_region
      %91 = dma.done [#allocation12], 16
    $region53: #{tpu_custom_call.1} parent=1 // pred_fallthru
      _
    %92 = sfence
    %v93 = vld [vmem:[%s1] sm:$0xf]
    %v94 = vld [vmem:[%s2] sm:$0xf]
    %vm95 = vcmp.ge.s32.totalorder %v93, 4
    %vm96 = vcmp.lt.s32.totalorder %v93, 12
    %vm97 = vcmp.ge.s32.totalorder %v94, 4
    %vm98 = vcmp.lt.s32.totalorder %v94, 12
    %vm99 = vmand %vm95, %vm97
    %vm100 = vmand %vm95, %vm98
    %vm101 = vmand %vm96, %vm97
    %vm102 = vmand %vm96, %vm98
    %v103 = vld [vmem:[#allocation3] sm:$0xf]
    %s104 = scalar_lea.vmem [#allocation3], 4
    %v105 = vld [vmem:[%s104] sm:$0xf]
    %s106 = scalar_lea.vmem [#allocation3], 8
    %v107 = vld [vmem:[%s106] sm:$0xf]
    %s108 = scalar_lea.vmem [#allocation3], 12
    %v109 = vld [vmem:[%s108] sm:$0xf]
    %s110 = sld [smem:[#allocation7]]
    %v111 = vstv %s110
    %v112 = vmul.f32 %v103, %v111
    %s113 = sld [smem:[#allocation7 + $0x1]]
    %v114 = vstv %s113
    %v115 = vmul.f32 %v105, %v114
    %v116 = vadd.f32 %v112, %v115
    %s117 = sld [smem:[#allocation7 + $0x2]]
    %v118 = vstv %s117
    %v119 = vmul.f32 %v107, %v118
    %v120 = vadd.f32 %v116, %v119
    %s121 = sld [smem:[#allocation7 + $0x3]]
    %v122 = vstv %s121
    %v123 = vmul.f32 %v109, %v122
    %v124 = vadd.f32 %v120, %v123
    %v127 = vunpack.c.l.s4 1983009808
    %v128 = vunpack.c.0.s8 %v127
    %v129 = vlaneseq
    %v130 = vshrl.u32 %v129, 7
    %v131 = vsub.s32 %v128, %v130
    %v132 = vrot.slane %v124, %v131
    %v133 = vcombine.high %v132, %v132
    %136 = vrot.lane.b32.xlu0 %v132, 68
    %v137 = vpop.permute.xlu0 %136
    %138 = vrot.lane.b32.xlu0 %v133, 68
    %v139 = vpop.permute.xlu0 %138
    %v140 = vlaneseq
    %v141 = vand.u32 %v140, 127
    %vm142 = vcmp.lt.s32.totalorder %v141, 68
    %v143 = vsel %vm142, %v137, %v139
    %v144 = vsel %vm142, %v139, %v137
    %v147 = vcombine.low %v144, %v143
    %v149 = vunpack.c.l.s4 1983009808
    %v150 = vunpack.c.0.s8 %v149
    %v151 = vlaneseq
    %v152 = vshrl.u32 %v151, 7
    %v153 = vsub.s32 %v150, %v152
    %v154 = vrot.slane %v147, %v153
    %v156 = vsel %vm99, %v154, 0.0
    %157 = vrot.lane.b32.xlu0 %v132, 64
    %v158 = vpop.permute.xlu0 %157
    %159 = vrot.lane.b32.xlu0 %v133, 64
    %v160 = vpop.permute.xlu0 %159
    %vm161 = vcmp.lt.s32.totalorder %v141, 64
    %v162 = vsel %vm161, %v158, %v160
    %v163 = vsel %vm161, %v160, %v158
    %v166 = vcombine.low %v163, %v162
    %v168 = vunpack.c.l.s4 1983009808
    %v169 = vunpack.c.0.s8 %v168
    %v170 = vlaneseq
    %v171 = vshrl.u32 %v170, 7
    %v172 = vsub.s32 %v169, %v171
    %v173 = vrot.slane %v166, %v172
    %v175 = vsel %vm95, %v173, 0.0
    %176 = vrot.lane.b32.xlu0 %v132, 60
    %v177 = vpop.permute.xlu0 %176
    %178 = vrot.lane.b32.xlu0 %v133, 60
    %v179 = vpop.permute.xlu0 %178
    %vm180 = vcmp.lt.s32.totalorder %v141, 60
    %v181 = vsel %vm180, %v177, %v179
    %v182 = vsel %vm180, %v179, %v177
    %v185 = vcombine.low %v182, %v181
    %v187 = vunpack.c.l.s4 1983009808
    %v188 = vunpack.c.0.s8 %v187
    %v189 = vlaneseq
    %v190 = vshrl.u32 %v189, 7
    %v191 = vsub.s32 %v188, %v190
    %v192 = vrot.slane %v185, %v191
    %v194 = vsel %vm100, %v192, 0.0
    %195 = vrot.lane.b32.xlu0 %v132, 4
    %v196 = vpop.permute.xlu0 %195
    %197 = vrot.lane.b32.xlu0 %v133, 4
    %v198 = vpop.permute.xlu0 %197
    %vm199 = vcmp.lt.s32.totalorder %v141, 4
    %v200 = vsel %vm199, %v196, %v198
    %v201 = vsel %vm199, %v198, %v196
    %v204 = vcombine.low %v201, %v200
    %v206 = vunpack.c.l.s4 1983009808
    %v207 = vunpack.c.0.s8 %v206
    %v208 = vlaneseq
    %v209 = vshrl.u32 %v208, 7
    %v210 = vsub.s32 %v207, %v209
    %v211 = vrot.slane %v204, %v210
    %v213 = vsel %vm97, %v211, 0.0
    %214 = vrot.lane.b32.xlu0 %v132, 124
    %v215 = vpop.permute.xlu0 %214
    %216 = vrot.lane.b32.xlu0 %v133, 124
    %v217 = vpop.permute.xlu0 %216
    %vm218 = vcmp.lt.s32.totalorder %v141, 124
    %v219 = vsel %vm218, %v215, %v217
    %v220 = vsel %vm218, %v217, %v215
    %v223 = vcombine.low %v219, %v220
    %v225 = vunpack.c.l.s4 1983009808
    %v226 = vunpack.c.0.s8 %v225
    %v227 = vlaneseq
    %v228 = vshrl.u32 %v227, 7
    %v229 = vsub.s32 %v226, %v228
    %v230 = vrot.slane %v223, %v229
    %v232 = vsel %vm98, %v230, 0.0
    %v233 = vcombine.low %v143, %v144
    %v235 = vunpack.c.l.s4 1983009808
    %v236 = vunpack.c.0.s8 %v235
    %v237 = vlaneseq
    %v238 = vshrl.u32 %v237, 7
    %v239 = vsub.s32 %v236, %v238
    %v240 = vrot.slane %v233, %v239
    %v242 = vsel %vm101, %v240, 0.0
    %v243 = vcombine.low %v162, %v163
    %v245 = vunpack.c.l.s4 1983009808
    %v246 = vunpack.c.0.s8 %v245
    %v247 = vlaneseq
    %v248 = vshrl.u32 %v247, 7
    %v249 = vsub.s32 %v246, %v248
    %v250 = vrot.slane %v243, %v249
    %v252 = vsel %vm96, %v250, 0.0
    %v253 = vcombine.low %v181, %v182
    %v255 = vunpack.c.l.s4 1983009808
    %v256 = vunpack.c.0.s8 %v255
    %v257 = vlaneseq
    %v258 = vshrl.u32 %v257, 7
    %v259 = vsub.s32 %v256, %v258
    %v260 = vrot.slane %v253, %v259
    %v262 = vsel %vm102, %v260, 0.0
    %s263 = sld [smem:[#allocation8]]
    %v264 = vstv %s263
    %v265 = vmul.f32 %v156, %v264
    %s266 = sld [smem:[#allocation8 + $0x1]]
    %v267 = vstv %s266
    %v268 = vmul.f32 %v175, %v267
    %v269 = vadd.f32 %v265, %v268
    %s270 = sld [smem:[#allocation8 + $0x2]]
    %v271 = vstv %s270
    %v272 = vmul.f32 %v194, %v271
    %v273 = vadd.f32 %v269, %v272
    %s274 = sld [smem:[#allocation8 + $0x3]]
    %v275 = vstv %s274
    %v276 = vmul.f32 %v213, %v275
    %v277 = vadd.f32 %v273, %v276
    %s278 = sld [smem:[#allocation8 + $0x4]]
    %v279 = vstv %s278
    %v280 = vmul.f32 %v124, %v279
    %v281 = vadd.f32 %v277, %v280
    %s282 = sld [smem:[#allocation8 + $0x5]]
    %v283 = vstv %s282
    %v284 = vmul.f32 %v232, %v283
    %v285 = vadd.f32 %v281, %v284
    %s286 = sld [smem:[#allocation8 + $0x6]]
    %v287 = vstv %s286
    %v288 = vmul.f32 %v242, %v287
    %v289 = vadd.f32 %v285, %v288
    %s290 = sld [smem:[#allocation8 + $0x7]]
    %v291 = vstv %s290
    %v292 = vmul.f32 %v252, %v291
    %v293 = vadd.f32 %v289, %v292
    %s294 = sld [smem:[#allocation8 + $0x8]]
    %v295 = vstv %s294
    %v296 = vmul.f32 %v262, %v295
    %v297 = vadd.f32 %v293, %v296
    %v300 = vunpack.c.l.s4 1983009808
    %v301 = vunpack.c.0.s8 %v300
    %v302 = vlaneseq
    %v303 = vshrl.u32 %v302, 7
    %v304 = vsub.s32 %v301, %v303
    %v305 = vrot.slane %v297, %v304
    %v306 = vcombine.high %v305, %v305
    %309 = vrot.lane.b32.xlu0 %v305, 68
    %v310 = vpop.permute.xlu0 %309
    %311 = vrot.lane.b32.xlu0 %v306, 68
    %v312 = vpop.permute.xlu0 %311
    %v313 = vsel %vm142, %v310, %v312
    %v314 = vsel %vm142, %v312, %v310
    %v317 = vcombine.low %v314, %v313
    %v319 = vunpack.c.l.s4 1983009808
    %v320 = vunpack.c.0.s8 %v319
    %v321 = vlaneseq
    %v322 = vshrl.u32 %v321, 7
    %v323 = vsub.s32 %v320, %v322
    %v324 = vrot.slane %v317, %v323
    %v326 = vsel %vm99, %v324, 0.0
    %327 = vrot.lane.b32.xlu0 %v305, 64
    %v328 = vpop.permute.xlu0 %327
    %329 = vrot.lane.b32.xlu0 %v306, 64
    %v330 = vpop.permute.xlu0 %329
    %v331 = vsel %vm161, %v328, %v330
    %v332 = vsel %vm161, %v330, %v328
    %v335 = vcombine.low %v332, %v331
    %v337 = vunpack.c.l.s4 1983009808
    %v338 = vunpack.c.0.s8 %v337
    %v339 = vlaneseq
    %v340 = vshrl.u32 %v339, 7
    %v341 = vsub.s32 %v338, %v340
    %v342 = vrot.slane %v335, %v341
    %v344 = vsel %vm95, %v342, 0.0
    %345 = vrot.lane.b32.xlu0 %v305, 60
    %v346 = vpop.permute.xlu0 %345
    %347 = vrot.lane.b32.xlu0 %v306, 60
    %v348 = vpop.permute.xlu0 %347
    %v349 = vsel %vm180, %v346, %v348
    %v350 = vsel %vm180, %v348, %v346
    %v353 = vcombine.low %v350, %v349
    %v355 = vunpack.c.l.s4 1983009808
    %v356 = vunpack.c.0.s8 %v355
    %v357 = vlaneseq
    %v358 = vshrl.u32 %v357, 7
    %v359 = vsub.s32 %v356, %v358
    %v360 = vrot.slane %v353, %v359
    %v362 = vsel %vm100, %v360, 0.0
    %363 = vrot.lane.b32.xlu0 %v305, 4
    %v364 = vpop.permute.xlu0 %363
    %365 = vrot.lane.b32.xlu0 %v306, 4
    %v366 = vpop.permute.xlu0 %365
    %v367 = vsel %vm199, %v364, %v366
    %v368 = vsel %vm199, %v366, %v364
    %v371 = vcombine.low %v368, %v367
    %v373 = vunpack.c.l.s4 1983009808
    %v374 = vunpack.c.0.s8 %v373
    %v375 = vlaneseq
    %v376 = vshrl.u32 %v375, 7
    %v377 = vsub.s32 %v374, %v376
    %v378 = vrot.slane %v371, %v377
    %v380 = vsel %vm97, %v378, 0.0
    %381 = vrot.lane.b32.xlu0 %v305, 124
    %v382 = vpop.permute.xlu0 %381
    %383 = vrot.lane.b32.xlu0 %v306, 124
    %v384 = vpop.permute.xlu0 %383
    %v385 = vsel %vm218, %v382, %v384
    %v386 = vsel %vm218, %v384, %v382
    %v389 = vcombine.low %v385, %v386
    %v391 = vunpack.c.l.s4 1983009808
    %v392 = vunpack.c.0.s8 %v391
    %v393 = vlaneseq
    %v394 = vshrl.u32 %v393, 7
    %v395 = vsub.s32 %v392, %v394
    %v396 = vrot.slane %v389, %v395
    %v398 = vsel %vm98, %v396, 0.0
    %v399 = vcombine.low %v313, %v314
    %v401 = vunpack.c.l.s4 1983009808
    %v402 = vunpack.c.0.s8 %v401
    %v403 = vlaneseq
    %v404 = vshrl.u32 %v403, 7
    %v405 = vsub.s32 %v402, %v404
    %v406 = vrot.slane %v399, %v405
    %v408 = vsel %vm101, %v406, 0.0
    %v409 = vcombine.low %v331, %v332
    %v411 = vunpack.c.l.s4 1983009808
    %v412 = vunpack.c.0.s8 %v411
    %v413 = vlaneseq
    %v414 = vshrl.u32 %v413, 7
    %v415 = vsub.s32 %v412, %v414
    %v416 = vrot.slane %v409, %v415
    %v418 = vsel %vm96, %v416, 0.0
    %v419 = vcombine.low %v349, %v350
    %v421 = vunpack.c.l.s4 1983009808
    %v422 = vunpack.c.0.s8 %v421
    %v423 = vlaneseq
    %v424 = vshrl.u32 %v423, 7
    %v425 = vsub.s32 %v422, %v424
    %v426 = vrot.slane %v419, %v425
    %v428 = vsel %vm102, %v426, 0.0
    %s429 = sld [smem:[#allocation10]]
    %v430 = vstv %s429
    %v431 = vmul.f32 %v326, %v430
    %s432 = sld [smem:[#allocation10 + $0x1]]
    %v433 = vstv %s432
    %v434 = vmul.f32 %v344, %v433
    %v435 = vadd.f32 %v431, %v434
    %s436 = sld [smem:[#allocation10 + $0x2]]
    %v437 = vstv %s436
    %v438 = vmul.f32 %v362, %v437
    %v439 = vadd.f32 %v435, %v438
    %s440 = sld [smem:[#allocation10 + $0x3]]
    %v441 = vstv %s440
    %v442 = vmul.f32 %v380, %v441
    %v443 = vadd.f32 %v439, %v442
    %s444 = sld [smem:[#allocation10 + $0x4]]
    %v445 = vstv %s444
    %v446 = vmul.f32 %v297, %v445
    %v447 = vadd.f32 %v443, %v446
    %s448 = sld [smem:[#allocation10 + $0x5]]
    %v449 = vstv %s448
    %v450 = vmul.f32 %v398, %v449
    %v451 = vadd.f32 %v447, %v450
    %s452 = sld [smem:[#allocation10 + $0x6]]
    %v453 = vstv %s452
    %v454 = vmul.f32 %v408, %v453
    %v455 = vadd.f32 %v451, %v454
    %s456 = sld [smem:[#allocation10 + $0x7]]
    %v457 = vstv %s456
    %v458 = vmul.f32 %v418, %v457
    %v459 = vadd.f32 %v455, %v458
    %s460 = sld [smem:[#allocation10 + $0x8]]
    %v461 = vstv %s460
    %v462 = vmul.f32 %v428, %v461
    %v463 = vadd.f32 %v459, %v462
    %s464 = sld [smem:[#allocation11]]
    %s465 = sld [smem:[#allocation11 + $0x1]]
    %s466 = sld [smem:[#allocation11 + $0x2]]
    %s467 = sld [smem:[#allocation11 + $0x3]]
    %s468 = sld [smem:[#allocation11 + $0x4]]
    %s469 = sadd.f32 %s467, %s468
    %v470 = vstv %s469
    %v471 = vrsqrt.pop %v470
    %s472 = vtos %v471
    %s473 = smul.f32 %s464, %s472
    %s474 = smul.f32 %s466, %s473
    %s475 = ssub.f32 %s465, %s474
    %s476 = sld [smem:[#allocation2]]
    %s477 = smul.f32 %s476, %s473
    %v478 = vstv %s477
    %v479 = vmul.f32 %v463, %v478
    %v480 = vstv %s475
    %v481 = vadd.f32 %v479, %v480
    %482 = vst [vmem:[#allocation13] sm:$0xf] %v481
    // Predicated region
    $region54: #{tpu_custom_call.1} parent=1 // pred_check
      _
    $region55: #{tpu_custom_call.1} parent=1 // pred_check_branch
      %484 = sbr.rel (0) target = $region57
    $region56: #{tpu_custom_call.1} parent=1 // pred_region
      %s486 = ssub.s32 64, 64
      %487 = vsyncadd [#allocation5], %s486
      %s489 = sshll.u32 [#allocation13], 4
      %s490 = int_to_ptr.vmem [resolvable:$true] %s489
      %492 = dma.vmem_to_hbm [thread:$0]  %s490, 64, %s8, [#allocation5]
    $region57: #{tpu_custom_call.1} parent=1 // pred_fallthru
      _
    // Predicated region
    $region58: #{tpu_custom_call.1} parent=1 // pred_check
      _
    $region59: #{tpu_custom_call.1} parent=1 // pred_check_branch
      %494 = sbr.rel (0) target = $region61
    $region60: #{tpu_custom_call.1} parent=1 // pred_region
      %495 = dma.done [#allocation5], 64
    $region61: #{tpu_custom_call.1} parent=1 // pred_fallthru
      _
    %496 = vsyncpa [#allocation4], 1
    %497 = vsyncpa [#allocation5], 1
    %498 = vsyncpa [#allocation6], 1
    %499 = vsyncpa [#allocation9], 1
    %500 = vsyncpa [#allocation12], 1

</llo_original>
